<compile_context>
chip_gen: v7x
topology: tpu7x:2x2x1
jax: 0.10.0
libtpu: 0.0.40
codegen_flags: <defaults>
</compile_context>

<pallas_src>
import functools

import jax
import jax.numpy as jnp
from jax.experimental import pallas as pl
from jax.experimental.pallas import tpu as pltpu


def _round_up(n, m):
    return ((n + m - 1) // m) * m


def _pick_tile(dim, desired, unit):
    """Tile size: multiple of `unit`, close to `desired`, with padding of `dim`
    bounded (prefer exact divisors of the `unit`-aligned dim -> zero padding)."""
    dim_a = _round_up(max(int(dim), 1), unit)
    m = dim_a // unit                       # aligned dim in units
    d_max = max(1, int(desired) // unit)    # desired tile in units
    if m <= d_max:
        return dim_a                        # one block covers the whole dim
    # Prefer an exact divisor in [d_max//2, d_max] -> no padding beyond `unit`.
    for d in range(d_max, max(1, d_max // 2) - 1, -1):
        if m % d == 0:
            return d * unit
    # Fallback: near-even split into cdiv(m, d_max) blocks; padding < 1 block.
    nb = -(-m // d_max)
    return (-(-m // nb)) * unit


# ----------------------------- kernels ------------------------------------


def _ws_linear_kernel_f32out(scale, x_ref, wt_ref, b_ref, o_ref):
    # f32 output: accumulate directly into the resident output tile.
    k = pl.program_id(2)

    @pl.when(k == 0)
    def _():
        o_ref[...] = jnp.zeros_like(o_ref)

    o_ref[...] += jnp.dot(
        x_ref[...], wt_ref[...], preferred_element_type=jnp.float32
    )

    @pl.when(k == pl.num_programs(2) - 1)
    def _():
        o_ref[...] = o_ref[...] * scale + b_ref[...]


def _ws_linear_kernel_acc(scale, x_ref, wt_ref, b_ref, o_ref, acc_ref):
    # Non-f32 output: f32 VMEM accumulator scratch, cast in the epilogue.
    k = pl.program_id(2)

    @pl.when(k == 0)
    def _():
        acc_ref[...] = jnp.zeros_like(acc_ref)

    acc_ref[...] += jnp.dot(
        x_ref[...], wt_ref[...], preferred_element_type=jnp.float32
    )

    @pl.when(k == pl.num_programs(2) - 1)
    def _():
        o_ref[...] = (acc_ref[...] * scale + b_ref[...]).astype(o_ref.dtype)


# ----------------------------- wrapper ------------------------------------


def prepare_ws_linear(weight, bias, *, tn=512, tk=1024, param_dtype=None):
    """One-time parameter prep (do this at module init, NOT per forward call).

    weight: (out_features, in_features) — nn.Linear layout
    bias:   (out_features,)
    param_dtype: e.g. jnp.bfloat16 to store MXU operands in bf16 (f32 accum).

    Returns (weight_t_padded, bias2d_padded, meta):
      weight_t_padded: (Kp, Np) — pre-transposed (IN, OUT), padded to tile mults
      bias2d_padded:   (1, Np) f32
      meta:            dict with in/out feature counts and chosen tn/tk
    """
    out_f, in_f = weight.shape
    tk = _pick_tile(in_f, tk, 128)
    tn = _pick_tile(out_f, tn, 128)
    Kp = _round_up(in_f, tk)
    Np = _round_up(out_f, tn)

    wt = jnp.asarray(weight).T  # (in_f, out_f) — lane-dense on output features
    if param_dtype is not None:
        wt = wt.astype(param_dtype)
    if (Kp, Np) != wt.shape:
        wt = jnp.pad(wt, ((0, Kp - in_f), (0, Np - out_f)))

    b = jnp.asarray(bias, dtype=jnp.float32)
    if Np != out_f:
        b = jnp.pad(b, (0, Np - out_f))
    b2d = b.reshape(1, Np)

    meta = dict(in_features=in_f, out_features=out_f, tn=tn, tk=tk)
    return wt, b2d, meta


def ws_linear(x, weight_t_p, bias2d_p, meta, *, gain=2.0, tm=256,
              out_dtype=None, weight_buffers=2):
    """Weight-scaled linear forward: (x * scale) @ W.T + bias.

    x:            (B, in_features)
    weight_t_p:   (Kp, Np) prepared by prepare_ws_linear()
    bias2d_p:     (1, Np)  prepared by prepare_ws_linear()
    """
    B, in_f = x.shape
    assert in_f == meta["in_features"], "x feature dim mismatch"
    out_f = meta["out_features"]
    tn = meta["tn"]
    tk = meta["tk"]
    Kp, Np = weight_t_p.shape

    scale = float((gain / in_f) ** 0.5)
    out_dtype = jnp.dtype(out_dtype or x.dtype)

    # Batch tile: multiple of 8 (sublane); 256 keeps the 256-wide MXUs of
    # v6e/v7x fully fed on large batches, clamps to B for small batches.
    tm = _pick_tile(B, tm, 8)
    Bp = _round_up(B, tm)

    # v7x has 2 TensorCores: make sure at least one "parallel" axis has >= 2
    # blocks so the second core isn't idle. Harmless on v5e/v6e (1 core).
    if Bp // tm == 1 and Np // tn == 1 and tn % 256 == 0:
        tn //= 2

    # Match x dtype to the stored parameter dtype (e.g. bf16 MXU operands).
    xp = x
    if weight_t_p.dtype in (jnp.bfloat16,) and xp.dtype != weight_t_p.dtype:
        xp = xp.astype(weight_t_p.dtype)
    # Only x is padded per call, and only when strictly needed.
    if (Bp, Kp) != xp.shape:
        xp = jnp.pad(xp, ((0, Bp - B), (0, Kp - in_f)))

    grid = (Bp // tm, Np // tn, Kp // tk)

    # VMEM footprint -> explicit limit (v5e default scoped limit is only
    # 16 MiB; v7x physical VMEM is 64 MiB, so cap headroom at ~48 MiB).
    bpe_x = xp.dtype.itemsize
    bpe_w = weight_t_p.dtype.itemsize
    bpe_o = out_dtype.itemsize
    use_acc_scratch = out_dtype != jnp.float32
    footprint = (2 * tm * tk * bpe_x
                 + max(2, weight_buffers) * tk * tn * bpe_w
                 + 2 * tn * 4
                 + 2 * tm * tn * bpe_o
                 + (tm * tn * 4 if use_acc_scratch else 0))
    vmem_limit = int(min(48 << 20, max(32 << 20, footprint + (4 << 20))))

    wt_spec_kwargs = {}
    if weight_buffers != 2:
        wt_spec_kwargs["pipeline_mode"] = pl.Buffered(weight_buffers)

    in_specs = [
        pl.BlockSpec((tm, tk), lambda i, j, k: (i, k)),
        pl.BlockSpec((tk, tn), lambda i, j, k: (k, j), **wt_spec_kwargs),
        pl.BlockSpec((1, tn), lambda i, j, k: (0, j)),
    ]
    out_spec = pl.BlockSpec((tm, tn), lambda i, j, k: (i, j))

    if use_acc_scratch:
        kernel = functools.partial(_ws_linear_kernel_acc, scale)
        scratch_shapes = [pltpu.VMEM((tm, tn), jnp.float32)]
    else:
        kernel = functools.partial(_ws_linear_kernel_f32out, scale)
        scratch_shapes = []

    cost = pl.CostEstimate(
        flops=2 * Bp * Np * Kp,
        transcendentals=0,
        bytes_accessed=(xp.size * bpe_x + weight_t_p.size * bpe_w
                        + bias2d_p.size * 4 + Bp * Np * bpe_o),
    )

    out = pl.pallas_call(
        kernel,
        out_shape=jax.ShapeDtypeStruct((Bp, Np), out_dtype),
        grid_spec=pltpu.PrefetchScalarGridSpec(
            num_scalar_prefetch=0,
            grid=grid,
            in_specs=in_specs,
            out_specs=out_spec,
            scratch_shapes=scratch_shapes,
        ),
        compiler_params=pltpu.CompilerParams(
            dimension_semantics=("parallel", "parallel", "arbitrary"),
            vmem_limit_bytes=vmem_limit,
        ),
        cost_estimate=cost,
    )(xp, weight_t_p, bias2d_p)

    if Bp != B or Np != out_f:
        out = out[:B, :out_f]
    return out


if __name__ == "__main__":
    key = jax.random.PRNGKey(0)
    k_x, k_w = jax.random.split(key)

    batch = 8
    in_features = 32
    out_features = 64
    gain = 2.0

    # Deterministic parameter init matching the module's __init__:
    #   nn.init.normal_(weight), nn.init.zeros_(bias)
    weight = jax.random.normal(k_w, (out_features, in_features), dtype=jnp.float32)
    bias = jnp.zeros((out_features,), dtype=jnp.float32)

    # One-time parameter prep (transpose + pad) — NOT per forward call.
    weight_t_p, bias2d_p, meta = prepare_ws_linear(weight, bias)

    x = jax.random.normal(k_x, (batch, in_features), dtype=jnp.float32)

    out = ws_linear(x, weight_t_p, bias2d_p, meta, gain=gain)
    out = jax.block_until_ready(out)

    # Reference check in plain JAX (matches the PyTorch forward).
    scale = (gain / in_features) ** 0.5
    ref = (x * scale) @ weight.T + bias
    assert out.shape == (batch, out_features)
    assert jnp.allclose(out, ref, atol=1e-5, rtol=1e-5)

    print("KERNEL_OK")
</pallas_src>

<mosaic_0001>
module attributes {stable_mosaic.version = 11 : i64} {
  func.func @_ws_linear_kernel_f32out(%arg0: i32, %arg1: i32, %arg2: i32, %arg3: memref<8x128xf32, #tpu.memory_space<vmem>>, %arg4: memref<128x128xf32, #tpu.memory_space<vmem>>, %arg5: memref<1x128xf32, #tpu.memory_space<vmem>>, %arg6: memref<8x128xf32, #tpu.memory_space<vmem>>) attributes {dimension_semantics = [#tpu.dimension_semantics<parallel>, #tpu.dimension_semantics<parallel>, #tpu.dimension_semantics<arbitrary>], iteration_bounds = array<i64: 1, 1, 1>, scalar_prefetch = 0 : i64, scratch_operands = 0 : i64, tpu.core_type = #tpu.core_type<tc>, window_params = [{transform_indices = @transform_0, window_bounds = array<i64: 8, 128>}, {transform_indices = @transform_1, window_bounds = array<i64: 128, 128>}, {transform_indices = @transform_2, window_bounds = array<i64: 1, 128>}, {transform_indices = @transform_3, window_bounds = array<i64: 8, 128>}]} {
    %c0_i32 = arith.constant 0 : i32
    %0 = arith.cmpi eq, %arg2, %c0_i32 : i32
    %1 = arith.extui %0 : i1 to i32
    %c0_i32_0 = arith.constant 0 : i32
    %2 = arith.cmpi ne, %1, %c0_i32_0 : i32
    scf.if %2 {
      %cst_10 = arith.constant 0.000000e+00 : f32
      %12 = vector.broadcast %cst_10 : f32 to vector<8x128xf32>
      %c0_11 = arith.constant 0 : index
      %c0_12 = arith.constant 0 : index
      %13 = vector.load %arg6[%c0_11, %c0_12] : memref<8x128xf32, #tpu.memory_space<vmem>>, vector<8x128xf32>
      tpu.vector_store %arg6[%c0_11, %c0_12], %12 {strides = array<i32>} : memref<8x128xf32, #tpu.memory_space<vmem>>, vector<8x128xf32>,
    } else {
    }
    %c0 = arith.constant 0 : index
    %c0_1 = arith.constant 0 : index
    %3 = vector.load %arg6[%c0, %c0_1] : memref<8x128xf32, #tpu.memory_space<vmem>>, vector<8x128xf32>
    %c0_2 = arith.constant 0 : index
    %c0_3 = arith.constant 0 : index
    %4 = vector.load %arg3[%c0_2, %c0_3] : memref<8x128xf32, #tpu.memory_space<vmem>>, vector<8x128xf32>
    %c0_4 = arith.constant 0 : index
    %c0_5 = arith.constant 0 : index
    %5 = vector.load %arg4[%c0_4, %c0_5] : memref<128x128xf32, #tpu.memory_space<vmem>>, vector<128x128xf32>
    %cst = arith.constant dense<0.000000e+00> : vector<8x128xf32>
    %6 = tpu.matmul %4, %5, %cst {dimension_numbers = #tpu.dot_dimension_numbers<[1], [0], [0], [1], [0, 0, 1, 1], [], []>} : vector<8x128xf32>, vector<128x128xf32>, vector<8x128xf32> -> vector<8x128xf32>
    %7 = arith.addf %3, %6 : vector<8x128xf32>
    %c0_6 = arith.constant 0 : index
    %c0_7 = arith.constant 0 : index
    %8 = vector.load %arg6[%c0_6, %c0_7] : memref<8x128xf32, #tpu.memory_space<vmem>>, vector<8x128xf32>
    tpu.vector_store %arg6[%c0_6, %c0_7], %7 {strides = array<i32>} : memref<8x128xf32, #tpu.memory_space<vmem>>, vector<8x128xf32>,
    %c0_i32_8 = arith.constant 0 : i32
    %9 = arith.cmpi eq, %arg2, %c0_i32_8 : i32
    %10 = arith.extui %9 : i1 to i32
    %c0_i32_9 = arith.constant 0 : i32
    %11 = arith.cmpi ne, %10, %c0_i32_9 : i32
    scf.if %11 {
      %c0_10 = arith.constant 0 : index
      %c0_11 = arith.constant 0 : index
      %12 = vector.load %arg6[%c0_10, %c0_11] : memref<8x128xf32, #tpu.memory_space<vmem>>, vector<8x128xf32>
      %cst_12 = arith.constant 2.500000e-01 : f32
      %13 = vector.broadcast %cst_12 : f32 to vector<8x128xf32>
      %14 = arith.mulf %12, %13 : vector<8x128xf32>
      %c0_13 = arith.constant 0 : index
      %c0_14 = arith.constant 0 : index
      %15 = vector.load %arg5[%c0_13, %c0_14] : memref<1x128xf32, #tpu.memory_space<vmem>>, vector<1x128xf32>
      %16 = vector.broadcast %15 : vector<1x128xf32> to vector<8x128xf32>
      %17 = arith.addf %14, %16 : vector<8x128xf32>
      %c0_15 = arith.constant 0 : index
      %c0_16 = arith.constant 0 : index
      %18 = vector.load %arg6[%c0_15, %c0_16] : memref<8x128xf32, #tpu.memory_space<vmem>>, vector<8x128xf32>
      tpu.vector_store %arg6[%c0_15, %c0_16], %17 {strides = array<i32>} : memref<8x128xf32, #tpu.memory_space<vmem>>, vector<8x128xf32>,
    } else {
    }
    return
  }
  func.func @transform_0(%arg0: i32, %arg1: i32, %arg2: i32) -> (i32, i32) {
    %c0_i32 = arith.constant 0 : i32
    return %arg0, %arg2 : i32, i32
  }
  func.func @transform_1(%arg0: i32, %arg1: i32, %arg2: i32) -> (i32, i32) {
    %c0_i32 = arith.constant 0 : i32
    return %arg2, %arg1 : i32, i32
  }
  func.func @transform_2(%arg0: i32, %arg1: i32, %arg2: i32) -> (i32, i32) {
    %c0_i32 = arith.constant 0 : i32
    %c0_i32_0 = arith.constant 0 : i32
    return %c0_i32, %arg1 : i32, i32
  }
  func.func @transform_3(%arg0: i32, %arg1: i32, %arg2: i32) -> (i32, i32) {
    %c0_i32 = arith.constant 0 : i32
    return %arg0, %arg1 : i32, i32
  }
}

</mosaic_0001>

<llo_original>
// kernel: tpu_custom_call.1
$region0: #{tpu_custom_call.1}
  #allocation0 [shape = 'u32[]', space=smem, size = 0x4, offset = 0x4, fixed_abs, tag = 'smem constant byte address 0x4 - core index']
  #allocation1 [shape = 'u32[144,128]{1,0:T(1,128)}', space=vmem, size = 0x12000, scoped, tag = 'internal scratch']
  %s0 = inlined_call_operand.hbm [shape: f32[8,128], index: 0, kind: input, shape index: {}]
  %s1 = inlined_call_operand.hbm [shape: f32[128,128], index: 1, kind: input, shape index: {}]
  %s2 = inlined_call_operand.vmem [shape: f32[1,128], index: 2, kind: input, shape index: {}]
  %s3 = inlined_call_operand.hbm [shape: f32[8,128], index: 3, kind: output, shape index: {}]
  %s4 = sld [smem:[#allocation0]]
  $region38: #{tpu_custom_call.1} parent=0
    _
  %s6 = ssub.s32 1, %s4
  %s7 = scalar_select 0, %s6, %s4
  $region1: #{tpu_custom_call.1} parent=0
    #allocation2 [shape = 'u8[4096]{0}', space=vmem, size = 0x1000, scoped, tag = 'input window, operand 0, single buffered']
    #allocation3 [shape = 's32[1]{0}', space=sflag, size = 0x4, scoped, tag = 'scoped memory for tpu_custom_call.1']
    #allocation4 [shape = 's32[1]{0}', space=sflag, size = 0x4, scoped, tag = 'scoped memory for tpu_custom_call.1']
    #allocation5 [shape = 'u8[65536]{0}', space=vmem, size = 0x10000, scoped, tag = 'input window, operand 1, single buffered']
    #allocation6 [shape = 's32[1]{0}', space=sflag, size = 0x4, scoped, tag = 'scoped memory for tpu_custom_call.1']
    #allocation7 [shape = 'u8[4096]{0}', space=vmem, size = 0x1000, scoped, tag = 'output window, operand 0, single buffered']
    %8 = vsyncpa [#allocation3], 0
    %9 = vsyncpa [#allocation6], 0
    %10 = vsyncpa [#allocation4], 0
    // Predicated region
    $region2: #{tpu_custom_call.1} parent=1 // pred_check
      _
    $region3: #{tpu_custom_call.1} parent=1 // pred_check_branch
      %12 = sbr.rel (0) target = $region5
    $region4: #{tpu_custom_call.1} parent=1 // pred_region
      %s14 = ssub.s32 128, 128
      %15 = vsyncadd [#allocation3], %s14
      %s17 = sshll.u32 [#allocation2], 4
      %s18 = int_to_ptr.vmem [resolvable:$true] %s17
      %20 = dma.hbm_to_vmem [thread:$0]  %s0, 128, %s18, [#allocation3]
    $region5: #{tpu_custom_call.1} parent=1 // pred_fallthru
      _
    // Predicated region
    $region6: #{tpu_custom_call.1} parent=1 // pred_check
      _
    $region7: #{tpu_custom_call.1} parent=1 // pred_check_branch
      %22 = sbr.rel (0) target = $region9
    $region8: #{tpu_custom_call.1} parent=1 // pred_region
      %s24 = ssub.s32 2048, 2048
      %25 = vsyncadd [#allocation6], %s24
      %s26 = sshll.u32 [#allocation5], 4
      %s27 = int_to_ptr.vmem [resolvable:$true] %s26
      %32 = dma.hbm_to_vmem [thread:$0]  %s1, 2048, %s27, [#allocation6], 128, 128, 8
    $region9: #{tpu_custom_call.1} parent=1 // pred_fallthru
      _
    // Predicated region
    $region10: #{tpu_custom_call.1} parent=1 // pred_check
      _
    $region11: #{tpu_custom_call.1} parent=1 // pred_check_branch
      %34 = sbr.rel (0) target = $region13
    $region12: #{tpu_custom_call.1} parent=1 // pred_region
      _
    $region13: #{tpu_custom_call.1} parent=1 // pred_fallthru
      _
    // Predicated region
    $region14: #{tpu_custom_call.1} parent=1 // pred_check
      _
    $region15: #{tpu_custom_call.1} parent=1 // pred_check_branch
      %36 = sbr.rel (0) target = $region17
    $region16: #{tpu_custom_call.1} parent=1 // pred_region
      %37 = dma.done [#allocation3], 128
    $region17: #{tpu_custom_call.1} parent=1 // pred_fallthru
      _
    // Predicated region
    $region18: #{tpu_custom_call.1} parent=1 // pred_check
      _
    $region19: #{tpu_custom_call.1} parent=1 // pred_check_branch
      %39 = sbr.rel (0) target = $region21
    $region20: #{tpu_custom_call.1} parent=1 // pred_region
      %40 = dma.done [#allocation6], 2048
    $region21: #{tpu_custom_call.1} parent=1 // pred_fallthru
      _
    %p41 = scmp.eq.s32.totalorder 0, 0
    // Predicated region
    $region22: #{tpu_custom_call.1} parent=1 // pred_check
      %p42 = pneg %p41
    $region23: #{tpu_custom_call.1} parent=1 // pred_check_branch
      %44 = sbr.rel (%p42) target = $region25
    $region24: #{tpu_custom_call.1} parent=1 // pred_region
      %45 = vst [vmem:[#allocation7] sm:$0xff] 0.0
    $region25: #{tpu_custom_call.1} parent=1 // pred_fallthru
      _
    %v46 = vld [vmem:[#allocation7] sm:$0xff]
    %v47 = vld [vmem:[#allocation2] sm:$0xff]
    %v48 = vld [vmem:[#allocation5] sm:$0xff]
    %v49 = vld [vmem:[#allocation5 + $0x8] sm:$0xff]
    %v50 = vld [vmem:[#allocation5 + $0x10] sm:$0xff]
    %v51 = vld [vmem:[#allocation5 + $0x18] sm:$0xff]
    %v52 = vld [vmem:[#allocation5 + $0x20] sm:$0xff]
    %v53 = vld [vmem:[#allocation5 + $0x28] sm:$0xff]
    %v54 = vld [vmem:[#allocation5 + $0x30] sm:$0xff]
    %v55 = vld [vmem:[#allocation5 + $0x38] sm:$0xff]
    %v56 = vld [vmem:[#allocation5 + $0x40] sm:$0xff]
    %v57 = vld [vmem:[#allocation5 + $0x48] sm:$0xff]
    %v58 = vld [vmem:[#allocation5 + $0x50] sm:$0xff]
    %v59 = vld [vmem:[#allocation5 + $0x58] sm:$0xff]
    %v60 = vld [vmem:[#allocation5 + $0x60] sm:$0xff]
    %v61 = vld [vmem:[#allocation5 + $0x68] sm:$0xff]
    %v62 = vld [vmem:[#allocation5 + $0x70] sm:$0xff]
    %v63 = vld [vmem:[#allocation5 + $0x78] sm:$0xff]
    %64 = vmatprep.subr.mxu0 0.0
    %65 = vmatpush1.msra.mxu0 %v48
    %66 = vmatprep.subr.mxu0 0.0
    %67 = vmatpush1.msra.mxu0 %v49
    %68 = vmatprep.subr.mxu0 0.0
    %69 = vmatpush1.msra.mxu0 %v50
    %70 = vmatprep.subr.mxu0 0.0
    %71 = vmatpush1.msra.mxu0 %v51
    %72 = vmatprep.subr.mxu0 0.0
    %73 = vmatpush1.msra.mxu0 %v52
    %74 = vmatprep.subr.mxu0 0.0
    %75 = vmatpush1.msra.mxu0 %v53
    %76 = vmatprep.subr.mxu0 0.0
    %77 = vmatpush1.msra.mxu0 %v54
    %78 = vmatprep.subr.mxu0 0.0
    %79 = vmatpush1.msra.mxu0 %v55
    %80 = vmatprep.subr.mxu0 0.0
    %81 = vmatpush1.msra.mxu0 %v56
    %82 = vmatprep.subr.mxu0 0.0
    %83 = vmatpush1.msra.mxu0 %v57
    %84 = vmatprep.subr.mxu0 0.0
    %85 = vmatpush1.msra.mxu0 %v58
    %86 = vmatprep.subr.mxu0 0.0
    %87 = vmatpush1.msra.mxu0 %v59
    %88 = vmatprep.subr.mxu0 0.0
    %89 = vmatpush1.msra.mxu0 %v60
    %90 = vmatprep.subr.mxu0 0.0
    %91 = vmatpush1.msra.mxu0 %v61
    %92 = vmatprep.subr.mxu0 0.0
    %93 = vmatpush1.msra.mxu0 %v62
    %94 = vmatprep.subr.mxu0 0.0
    %95 = vmatpush1.msra.mxu0 %v63
    %96 = vmatprep.subr.mxu0 0.0
    %97 = vmatpush1.msra.mxu0 0.0
    %98 = vmatprep.subr.mxu0 0.0
    %99 = vmatpush1.msra.mxu0 0.0
    %100 = vmatprep.subr.mxu0 0.0
    %101 = vmatpush1.msra.mxu0 0.0
    %102 = vmatprep.subr.mxu0 0.0
    %103 = vmatpush1.msra.mxu0 0.0
    %104 = vmatprep.subr.mxu0 0.0
    %105 = vmatpush1.msra.mxu0 0.0
    %106 = vmatprep.subr.mxu0 0.0
    %107 = vmatpush1.msra.mxu0 0.0
    %108 = vmatprep.subr.mxu0 0.0
    %109 = vmatpush1.msra.mxu0 0.0
    %110 = vmatprep.subr.mxu0 0.0
    %111 = vmatpush1.msra.mxu0 0.0
    %112 = vmatprep.subr.mxu0 0.0
    %113 = vmatpush1.msra.mxu0 0.0
    %114 = vmatprep.subr.mxu0 0.0
    %115 = vmatpush1.msra.mxu0 0.0
    %116 = vmatprep.subr.mxu0 0.0
    %117 = vmatpush1.msra.mxu0 0.0
    %118 = vmatprep.subr.mxu0 0.0
    %119 = vmatpush1.msra.mxu0 0.0
    %120 = vmatprep.subr.mxu0 0.0
    %121 = vmatpush1.msra.mxu0 0.0
    %122 = vmatprep.subr.mxu0 0.0
    %123 = vmatpush1.msra.mxu0 0.0
    %124 = vmatprep.subr.mxu0 0.0
    %125 = vmatpush1.msra.mxu0 0.0
    %126 = vmatprep.subr.mxu0 0.0
    %127 = vmatpush1.msra.mxu0 0.0
    %128 = vmatprep.mubr.f32.mxu0 0.0
    %129 = vmatmul.mubr.f32.gmra.mrb[0].mxu0 %v47
    %v130 = vpop.f32.mrb[0].mxu0
    %v131 = vadd.f32 0.0, %v130
    %v132 = vpop.f32.mrb[0].mxu0
    %133 = vdwg.mxu0
    %v134 = vadd.f32 %v46, %v131
    %135 = vst [vmem:[#allocation7] sm:$0xff] %v134
    // Predicated region
    $region26: #{tpu_custom_call.1} parent=1 // pred_check
      %p136 = pneg %p41
    $region27: #{tpu_custom_call.1} parent=1 // pred_check_branch
      %138 = sbr.rel (%p136) target = $region29
    $region28: #{tpu_custom_call.1} parent=1 // pred_region
      %v139 = vld [vmem:[#allocation7] sm:$0xff]
      %v140 = vmul.f32 %v139, 0.25
      %v141 = vld [vmem:[%s2] sm:$0x1]
      %v143 = vlaneseq
      %v144 = vshrl.u32 %v143, 7
      %v145 = vsub.s32 0, %v144
      %v146 = vrot.slane %v141, %v145
      %v148 = vadd.f32 %v140, %v146
      %149 = vst [vmem:[#allocation7] sm:$0xff] %v148
    $region29: #{tpu_custom_call.1} parent=1 // pred_fallthru
      _
    // Predicated region
    $region30: #{tpu_custom_call.1} parent=1 // pred_check
      _
    $region31: #{tpu_custom_call.1} parent=1 // pred_check_branch
      %151 = sbr.rel (0) target = $region33
    $region32: #{tpu_custom_call.1} parent=1 // pred_region
      %s153 = ssub.s32 128, 128
      %154 = vsyncadd [#allocation4], %s153
      %s156 = sshll.u32 [#allocation7], 4
      %s157 = int_to_ptr.vmem [resolvable:$true] %s156
      %159 = dma.vmem_to_hbm [thread:$0]  %s157, 128, %s3, [#allocation4]
    $region33: #{tpu_custom_call.1} parent=1 // pred_fallthru
      _
    // Predicated region
    $region34: #{tpu_custom_call.1} parent=1 // pred_check
      _
    $region35: #{tpu_custom_call.1} parent=1 // pred_check_branch
      %161 = sbr.rel (0) target = $region37
    $region36: #{tpu_custom_call.1} parent=1 // pred_region
      %162 = dma.done [#allocation4], 128
    $region37: #{tpu_custom_call.1} parent=1 // pred_fallthru
      _
    %163 = vsyncpa [#allocation3], 1
    %164 = vsyncpa [#allocation6], 1
    %165 = vsyncpa [#allocation4], 1

</llo_original>
